<compile_context>
chip_gen: v5e
topology: v5e:2x2
jax: 0.10.0
libtpu: 0.0.40
codegen_flags: <defaults>
</compile_context>

<pallas_src>
import functools

import jax
import jax.numpy as jnp
from jax import lax
from jax.experimental import pallas as pl
from jax.experimental.pallas import tpu as pltpu


LANE = 128
_MiB = 1024 * 1024
# Conservative per-kernel VMEM budget: fits v7x's 32 MiB default scoped limit
# (64 MiB physical) with headroom; v5e/v6e have 128 MiB physical.
_VMEM_BUDGET = 24 * _MiB


def _round_up(v, m):
    return (v + m - 1) // m * m


def _vmem_limit(est_bytes):
    """Explicit scoped-VMEM request: 2x headroom, floor 32 MiB, capped well
    below v7x's 64 MiB physical VMEM."""
    return int(min(48 * _MiB, max(32 * _MiB, 2 * int(est_bytes))))


def _apply_act(y, act):
    if act == "silu":
        return y * jax.nn.sigmoid(y)
    if act == "relu":
        return jnp.maximum(y, 0.0)
    if act == "sigmoid":
        return jax.nn.sigmoid(y)
    return y  # "none"


# ----------------------------------------------------------------------------
# Kernel 1: fused matmul + bias + activation (BN scale pre-folded into w)
# ----------------------------------------------------------------------------
def _mm_resident_kernel(x_ref, w_ref, b_ref, o_ref, *, act):
    """grid=(M tiles,).  Whole (K,N) weight stays VMEM-resident; single dot."""
    y = jnp.dot(x_ref[...], w_ref[...], preferred_element_type=jnp.float32)
    y = _apply_act(y + b_ref[...], act)
    o_ref[...] = y.astype(o_ref.dtype)


def _mm_ktiled_kernel(x_ref, w_ref, b_ref, o_ref, acc_ref, *, act):
    """grid=(M tiles, K tiles).  f32 accumulator; epilogue on last K step."""
    k = pl.program_id(1)

    @pl.when(k == 0)
    def _():
        acc_ref[...] = jnp.zeros_like(acc_ref)

    acc_ref[...] += jnp.dot(x_ref[...], w_ref[...],
                            preferred_element_type=jnp.float32)

    @pl.when(k == pl.num_programs(1) - 1)
    def _():
        y = _apply_act(acc_ref[...] + b_ref[...], act)
        o_ref[...] = y.astype(o_ref.dtype)


def fused_matmul(x, w, bias, act="silu", out_dtype=jnp.bfloat16):
    """out = act(x @ w + bias);  x:[M,K], w:[K,N] (scale folded), bias:[N]."""
    M0, K0 = x.shape
    Kw, N0 = w.shape
    assert K0 == Kw
    out_bytes = jnp.dtype(out_dtype).itemsize

    # M tile: >= 2 tiles whenever M is large enough (keeps both v7x TCs busy);
    # a single full-extent block for small M (no pad, no slice pass).
    if M0 < 256:
        tm = M0
    else:
        tm = max(128, min(512, (M0 // 2) // 128 * 128))
    Mpad = _round_up(M0, tm)

    xb = x.astype(jnp.bfloat16)
    wb = w.astype(jnp.bfloat16)
    b2 = bias.astype(jnp.float32).reshape(1, N0)

    # ---- small-weight fast path: no K grid axis, weight resident in VMEM ----
    resident_bytes = (2 * tm * _round_up(K0, LANE) * 2            # x (dbl buf)
                      + _round_up(K0, 8) * _round_up(N0, LANE) * 2  # w resident
                      + 2 * tm * _round_up(N0, LANE) * out_bytes    # out
                      + 2 * LANE * 4)                               # bias
    if resident_bytes <= _VMEM_BUDGET:
        if Mpad != M0:
            xb = jnp.pad(xb, ((0, Mpad - M0), (0, 0)))
        out = pl.pallas_call(
            functools.partial(_mm_resident_kernel, act=act),
            out_shape=jax.ShapeDtypeStruct((Mpad, N0), out_dtype),
            grid_spec=pltpu.PrefetchScalarGridSpec(
                num_scalar_prefetch=0,
                grid=(Mpad // tm,),
                in_specs=[
                    pl.BlockSpec((tm, K0), lambda i: (i, 0)),
                    pl.BlockSpec((K0, N0), lambda i: (0, 0)),
                    pl.BlockSpec((1, N0), lambda i: (0, 0)),
                ],
                out_specs=pl.BlockSpec((tm, N0), lambda i: (i, 0)),
            ),
            compiler_params=pltpu.CompilerParams(
                dimension_semantics=("parallel",),
                vmem_limit_bytes=_vmem_limit(resident_bytes)),
        )(xb, wb, b2)
        return out[:M0] if Mpad != M0 else out

    # ---- large K*N fallback: K-tiled reduction (reduction axis last) --------
    Kpad = _round_up(K0, 256)                 # tk >= 256: 256-wide MXU v6e/v7x
    tk = 512 if Kpad % 512 == 0 else 256

    def tiled_bytes(tm_):
        return (3 * tm_ * tk * 2 + 2 * tk * _round_up(N0, LANE) * 2
                + 2 * tm_ * _round_up(N0, LANE) * out_bytes
                + tm_ * _round_up(N0, LANE) * 4)

    while tm > 128 and tiled_bytes(tm) > _VMEM_BUDGET:   # v7x VMEM gate
        tm //= 2
    Mpad = _round_up(M0, tm)
    if Mpad != M0 or Kpad != K0:
        xb = jnp.pad(xb, ((0, Mpad - M0), (0, Kpad - K0)))
    if Kpad != K0:
        wb = jnp.pad(wb, ((0, Kpad - K0), (0, 0)))
    out = pl.pallas_call(
        functools.partial(_mm_ktiled_kernel, act=act),
        out_shape=jax.ShapeDtypeStruct((Mpad, N0), out_dtype),
        grid_spec=pltpu.PrefetchScalarGridSpec(
            num_scalar_prefetch=0,
            grid=(Mpad // tm, Kpad // tk),
            in_specs=[
                pl.BlockSpec((tm, tk), lambda i, k: (i, k),
                             pipeline_mode=pl.Buffered(3)),
                pl.BlockSpec((tk, N0), lambda i, k: (k, 0)),
                pl.BlockSpec((1, N0), lambda i, k: (0, 0)),
            ],
            out_specs=pl.BlockSpec((tm, N0), lambda i, k: (i, 0)),
            scratch_shapes=[pltpu.VMEM((tm, N0), jnp.float32)],
        ),
        compiler_params=pltpu.CompilerParams(
            dimension_semantics=("parallel", "arbitrary"),
            vmem_limit_bytes=_vmem_limit(tiled_bytes(tm))),
    )(xb, wb, b2)
    return out[:M0] if Mpad != M0 else out


# ----------------------------------------------------------------------------
# Kernel 2: direct 3x3 stride-1 conv, patches built in-kernel (no HBM im2col)
# ----------------------------------------------------------------------------
def _conv3x3_s1_kernel(x_ref, w_ref, b_ref, o_ref, *, act):
    """One spatially pre-padded NHWC image per grid step; the 9 shifted taps
    are read straight out of the VMEM slab and accumulated on the MXU."""
    _, hp, wp, c = x_ref.shape
    ho, wo = hp - 2, wp - 2
    cout = w_ref.shape[-1]
    acc = jnp.zeros((ho * wo, cout), jnp.float32)
    for dh in range(3):
        for dw in range(3):
            tap = x_ref[0, dh:dh + ho, dw:dw + wo, :].reshape(ho * wo, c)
            acc = acc + jnp.dot(tap, w_ref[dh * 3 + dw],
                                preferred_element_type=jnp.float32)
    y = _apply_act(acc + b_ref[...], act)
    o_ref[0] = y.reshape(ho, wo, cout).astype(o_ref.dtype)


def _direct_conv_bytes(h, w_, c, cout, out_bytes):
    hp, wp = h + 2, w_ + 2
    return (2 * hp * _round_up(wp, 8) * max(c, LANE) * 2          # x slab
            + 9 * c * _round_up(cout, LANE) * 2                   # weights
            + 2 * h * w_ * _round_up(cout, LANE) * out_bytes      # out
            + 2 * h * w_ * max(_round_up(9 * c, LANE), LANE) * 4)  # acc/taps


def _direct_conv_ok(h, w_, c, cout, out_dtype):
    if w_ % 8 != 0:
        # Tiny / unaligned maps: the im2col fallback cost is negligible there.
        return False
    return _direct_conv_bytes(h, w_, c, cout,
                              jnp.dtype(out_dtype).itemsize) <= 20 * _MiB


def _conv3x3_direct(x, w_folded, bias, act, out_dtype):
    n, h, w_, c = x.shape
    cout = w_folded.shape[3]
    xp = jnp.pad(x.astype(jnp.bfloat16), ((0, 0), (1, 1), (1, 1), (0, 0)))
    hp, wp = h + 2, w_ + 2
    w9 = w_folded.reshape(9, c, cout).astype(jnp.bfloat16)
    b2 = bias.astype(jnp.float32).reshape(1, cout)
    est = _direct_conv_bytes(h, w_, c, cout, jnp.dtype(out_dtype).itemsize)
    # TODO(synk): for images too large for one VMEM slab, a halo'd row-group
    # BlockSpec would keep this path; such shapes fall back to im2col today.
    return pl.pallas_call(
        functools.partial(_conv3x3_s1_kernel, act=act),
        out_shape=jax.ShapeDtypeStruct((n, h, w_, cout), out_dtype),
        grid_spec=pltpu.PrefetchScalarGridSpec(
            num_scalar_prefetch=0,
            grid=(n,),
            in_specs=[
                pl.BlockSpec((1, hp, wp, c), lambda i: (i, 0, 0, 0)),
                pl.BlockSpec((9, c, cout), lambda i: (0, 0, 0)),
                pl.BlockSpec((1, cout), lambda i: (0, 0)),
            ],
            out_specs=pl.BlockSpec((1, h, w_, cout), lambda i: (i, 0, 0, 0)),
        ),
        compiler_params=pltpu.CompilerParams(
            dimension_semantics=("parallel",),
            vmem_limit_bytes=_vmem_limit(est)),
    )(xp, w9, b2)


# ----------------------------------------------------------------------------
# Conv helpers
# ----------------------------------------------------------------------------
def im2col(x, k, s, p):
    """Fallback patch builder (stride-2 / tiny maps).  x: NHWC -> [M, k*k*C]."""
    N, H, W, C = x.shape
    if p > 0:
        x = jnp.pad(x, ((0, 0), (p, p), (p, p), (0, 0)))
    Ho = (H + 2 * p - k) // s + 1
    Wo = (W + 2 * p - k) // s + 1
    if k == 1:
        patches = x[:, ::s, ::s, :]
    else:
        cols = []
        for dh in range(k):
            for dw in range(k):
                cols.append(x[:, dh:dh + (Ho - 1) * s + 1:s,
                              dw:dw + (Wo - 1) * s + 1:s, :])
        patches = jnp.concatenate(cols, axis=-1)
    return patches.reshape(N * Ho * Wo, k * k * C), (N, Ho, Wo)


def _folded_w(p):
    """Fold BN scale into the conv weights in f32 (before the bf16 cast)."""
    return (p["w"].astype(jnp.float32)
            * p["scale"].astype(jnp.float32)[None, None, None, :])


def _conv_fused(x, w_folded, bias, k, s, act="silu", out_dtype=jnp.bfloat16):
    n, h, w_, c = x.shape
    cout = w_folded.shape[3]
    if k == 3 and s == 1 and _direct_conv_ok(h, w_, c, cout, out_dtype):
        return _conv3x3_direct(x, w_folded, bias, act, out_dtype)
    pad = k // 2
    cols, (nb, ho, wo) = im2col(x.astype(jnp.bfloat16), k, s, pad)
    y = fused_matmul(cols, w_folded.reshape(k * k * c, cout), bias,
                     act, out_dtype)
    return y.reshape(nb, ho, wo, cout)


def conv_forward(x, p, s=1, act="silu", out_dtype=jnp.bfloat16):
    """Conv(k, s, autopad, bias=False) + folded-BN + activation.  x: NHWC."""
    # TODO(synk): grouped conv (g > 1) not implemented; g == 1 everywhere here.
    return _conv_fused(x, _folded_w(p), p["bias"], p["k"], s, act, out_dtype)


def conv_module_nchw(x_nchw, p, s=1, act="silu"):
    """PyTorch Conv.forward semantics: act(BN(conv(x))) on NCHW input."""
    x = jnp.transpose(x_nchw, (0, 2, 3, 1))
    y = conv_forward(x, p, s=s, act=act, out_dtype=jnp.bfloat16)
    return jnp.transpose(y, (0, 3, 1, 2)).astype(jnp.float32)


def conv_reference_nhwc(x, p, s, act):
    """Plain-XLA f32 reference for the fused Conv kernel (validation only)."""
    k = p["k"]
    pad = k // 2
    y = lax.conv_general_dilated(
        x.astype(jnp.float32), p["w"].astype(jnp.float32),
        window_strides=(s, s), padding=[(pad, pad), (pad, pad)],
        dimension_numbers=("NHWC", "HWIO", "NHWC"),
        precision=lax.Precision.HIGHEST)
    y = y * p["scale"] + p["bias"]
    return _apply_act(y, act)


def upsample2(x):  # nearest, scale_factor=2 (matches nn.Upsample nearest)
    return jnp.repeat(jnp.repeat(x, 2, axis=1), 2, axis=2)


# ----------------------------------------------------------------------------
# Deterministic synthetic parameters
# ----------------------------------------------------------------------------
class ParamGen:
    def __init__(self, seed=0):
        self.key = jax.random.PRNGKey(seed)

    def next(self):
        self.key, sub = jax.random.split(self.key)
        return sub


def make_conv(pg, cin, cout, k=1):
    """Conv2d(bias=False) + BatchNorm2d(eps=1e-3) folded to scale/bias."""
    fan_in = k * k * cin
    w = jax.random.normal(pg.next(), (k, k, cin, cout), jnp.float32)
    w = w * (0.3 / jnp.sqrt(fan_in))
    gamma = 1.0 + 0.1 * jax.random.normal(pg.next(), (cout,), jnp.float32)
    beta = 0.05 * jax.random.normal(pg.next(), (cout,), jnp.float32)
    mean = 0.05 * jax.random.normal(pg.next(), (cout,), jnp.float32)
    var = 1.0 + 0.1 * jnp.abs(jax.random.normal(pg.next(), (cout,), jnp.float32))
    eps = 1e-3
    scale = gamma / jnp.sqrt(var + eps)
    bias = beta - mean * scale
    return {"w": w, "scale": scale, "bias": bias, "k": k}


def make_plain(pg, cin, cout, k=1):
    """Bias-free conv without BN (CBAM MLP / spatial conv)."""
    fan_in = k * k * cin
    w = jax.random.normal(pg.next(), (k, k, cin, cout), jnp.float32)
    w = w * (0.3 / jnp.sqrt(fan_in))
    return {"w": w, "k": k}


def make_cbam(pg, c, ratio=16):
    hidden = max(c // ratio, 1)
    return {"fc1": make_plain(pg, c, hidden),
            "fc2": make_plain(pg, hidden, c),
            "spatial": make_plain(pg, 2, 1, k=7)}


def make_acm(pg, c1, c2):
    return {"adap": make_conv(pg, c2, c1, 1),
            "topdown": [make_conv(pg, c1, c1 // 4, 1),
                        make_conv(pg, c1 // 4, c1, 1)],
            "bottomup": [make_conv(pg, c1, c1 // 4, 1),
                         make_conv(pg, c1 // 4, c1, 1)],
            "post": make_conv(pg, c1, c1, 3)}


def make_c3(pg, c1, c2, n):
    c_ = c2 // 2  # e = 0.5
    return {"cv1": make_conv(pg, c1, c_, 1),
            "cv2": make_conv(pg, c1, c_, 1),
            "cv3": make_conv(pg, 2 * c_, c2, 1),
            "m": [{"cv1": make_conv(pg, c_, c_, 1),
                   "cv2": make_conv(pg, c_, c_, 3)} for _ in range(n)]}


def make_acmneck(pg, bc):
    return {
        "att3": make_cbam(pg, bc * 16),
        "att2": make_cbam(pg, bc * 8),
        "att1": make_cbam(pg, bc * 4),
        "ACM3": make_acm(pg, bc * 8, bc * 16),
        "ACM2": make_acm(pg, bc * 4, bc * 8),
        "ACM1": make_acm(pg, bc * 2, bc * 4),
        "conv_for_feat3": make_conv(pg, bc * 16, bc * 8, 1),
        "conv3_for_upsample1": make_c3(pg, bc * 16, bc * 8, 3),
        "conv_for_feat2": make_conv(pg, bc * 8, bc * 4, 1),
        "conv3_for_upsample2": make_c3(pg, bc * 8, bc * 4, 3),
        "down_sample1": make_conv(pg, bc * 4, bc * 4, 3),
        "conv3_for_downsample1": make_c3(pg, bc * 8, bc * 8, 3),
        "down_sample2": make_conv(pg, bc * 8, bc * 8, 3),
        "conv3_for_downsample2": make_c3(pg, bc * 16, bc * 16, 3),
        "down_sample0": make_conv(pg, bc * 16, bc * 16, 3),  # unused (dead)
    }


# ----------------------------------------------------------------------------
# Module forward functions (NHWC).  Tiny matmuls stay in plain XLA.
# ----------------------------------------------------------------------------
def _conv1x1_vec(v, p, act):
    """1x1 Conv+BN+act on a [N, C] vector (GAP tensor): plain XLA, no launch."""
    cout = p["w"].shape[3]
    y = v @ p["w"].reshape(p["w"].shape[2], cout)
    y = y * p["scale"] + p["bias"]
    return _apply_act(y, act)


def cbam_forward(x, p):
    """CBAM: channel attention (ratio=16 MLP) + 7x7 spatial attention.
    M = 2*batch, N <= C matmuls and the N=1 7x7 conv run in plain XLA."""
    n, h, w, c = x.shape
    xf = x.astype(jnp.float32)
    avg = jnp.mean(xf, axis=(1, 2))                      # [N, C]
    mx = jnp.max(xf, axis=(1, 2))                        # [N, C]
    v = jnp.concatenate([avg, mx], axis=0)               # one matmul, M = 2N
    hdim = p["fc1"]["w"].shape[3]
    hvec = jnp.maximum(v @ p["fc1"]["w"].reshape(c, hdim), 0.0)
    logits = hvec @ p["fc2"]["w"].reshape(hdim, c)
    ca = jax.nn.sigmoid(logits[:n] + logits[n:])         # [N, C]

    xca = xf * ca[:, None, None, :]
    sp = jnp.concatenate([jnp.mean(xca, axis=-1, keepdims=True),
                          jnp.max(xca, axis=-1, keepdims=True)], axis=-1)
    sa = jax.nn.sigmoid(lax.conv_general_dilated(
        sp, p["spatial"]["w"], (1, 1), [(3, 3), (3, 3)],
        dimension_numbers=("NHWC", "HWIO", "NHWC")))     # [N,H,W,1]
    return xca * sa


def acm_forward(x0, x1, p):
    x1 = upsample2(x1)
    x1 = conv_forward(x1, p["adap"])                                   # c2 -> c1
    f0 = conv_forward(conv_forward(x0, p["bottomup"][0], act="relu"),
                      p["bottomup"][1])                                # bottomup
    # topdown branch runs on the [N,1,1,c1] GAP tensor (M = batch): plain XLA.
    gap = jnp.mean(x1.astype(jnp.float32), axis=(1, 2))                # [N, c1]
    td = _conv1x1_vec(_conv1x1_vec(gap, p["topdown"][0], "relu"),
                      p["topdown"][1], "silu")                         # [N, c1]
    f = x0 * td[:, None, None, :] + f0 * x1
    return conv_forward(f, p["post"])


def bottleneck_forward(x, p, add):
    y = conv_forward(conv_forward(x, p["cv1"]), p["cv2"])
    return x + y if add else y


def c3_forward(x, p):
    # cv1 and cv2 read the same input with the same activation: fuse them into
    # one matmul with doubled N (one launch, one read of x, wider MXU N).
    c_ = p["cv1"]["w"].shape[3]
    w_cat = jnp.concatenate([_folded_w(p["cv1"]), _folded_w(p["cv2"])], axis=3)
    b_cat = jnp.concatenate([p["cv1"]["bias"], p["cv2"]["bias"]])
    y12 = _conv_fused(x, w_cat, b_cat, k=1, s=1, act="silu")
    y1, y2 = y12[..., :c_], y12[..., c_:]
    for bp in p["m"]:
        y1 = bottleneck_forward(y1, bp, add=False)   # shortcut=False in ACMneck
    return conv_forward(jnp.concatenate([y1, y2], axis=-1), p["cv3"])


def acmneck_forward(params, f0, f1, f2, f3):
    feat3 = cbam_forward(f3, params["att3"])
    feat2 = cbam_forward(f2, params["att2"])
    feat1 = cbam_forward(f1, params["att1"])
    feat2 = acm_forward(feat2, feat3, params["ACM3"])
    feat1 = acm_forward(feat1, feat2, params["ACM2"])
    feat0 = acm_forward(f0, feat1, params["ACM1"])

    # NOTE: down_sample0(feat3) is computed-and-discarded in the reference;
    # dropped here since it does not contribute to any output.
    P5 = conv_forward(feat3, params["conv_for_feat3"])
    P5_up = upsample2(P5)
    P4 = c3_forward(jnp.concatenate([P5_up, feat2], axis=-1),
                    params["conv3_for_upsample1"])
    P4 = conv_forward(P4, params["conv_for_feat2"])
    P4_up = upsample2(P4)
    P3 = c3_forward(jnp.concatenate([P4_up, feat1], axis=-1),
                    params["conv3_for_upsample2"])
    P2 = feat0
    P3_down = conv_forward(P3, params["down_sample1"], s=2)
    P4 = c3_forward(jnp.concatenate([P3_down, P4], axis=-1),
                    params["conv3_for_downsample1"])
    P4_down = conv_forward(P4, params["down_sample2"], s=2)
    P5 = c3_forward(jnp.concatenate([P4_down, P5], axis=-1),
                    params["conv3_for_downsample2"])
    return P2, P3, P4, P5


def acmneck_nchw(params, f0, f1, f2, f3):
    """Wrapper: accepts/returns NCHW f32 (PyTorch convention)."""
    to_nhwc = lambda t: jnp.transpose(t, (0, 2, 3, 1))
    to_nchw = lambda t: jnp.transpose(t.astype(jnp.float32), (0, 3, 1, 2))
    outs = acmneck_forward(params, to_nhwc(f0), to_nhwc(f1),
                           to_nhwc(f2), to_nhwc(f3))
    return tuple(to_nchw(o) for o in outs)


# ----------------------------------------------------------------------------
if __name__ == "__main__":
    key = jax.random.PRNGKey(0)
    k0, k1, k2, k3, kc1, kc2 = jax.random.split(key, 6)

    # ---- 1a) Conv (spec module), k=3 stride=2: im2col + resident matmul -----
    xc = jax.random.normal(kc1, (2, 8, 16, 16), jnp.float32)       # NCHW
    conv_p = make_conv(ParamGen(seed=11), 8, 16, k=3)              # Conv(8,16,3)
    y = conv_module_nchw(xc, conv_p, s=2, act="silu")
    y_ref = jnp.transpose(
        conv_reference_nhwc(jnp.transpose(xc, (0, 2, 3, 1)), conv_p, 2, "silu"),
        (0, 3, 1, 2))
    jax.block_until_ready((y, y_ref))
    assert y.shape == (2, 16, 8, 8), y.shape
    err = float(jnp.max(jnp.abs(y - y_ref)))
    assert err < 6e-2, f"fused Conv (k=3,s=2) mismatch vs reference: {err}"

    # ---- 1b) Conv (spec module), k=3 stride=1: direct in-kernel-patch conv --
    xs = jax.random.normal(kc2, (2, 16, 16, 16), jnp.float32)      # NCHW
    conv_p2 = make_conv(ParamGen(seed=13), 16, 32, k=3)            # Conv(16,32,3)
    y2 = conv_module_nchw(xs, conv_p2, s=1, act="silu")
    y2_ref = jnp.transpose(
        conv_reference_nhwc(jnp.transpose(xs, (0, 2, 3, 1)), conv_p2, 1, "silu"),
        (0, 3, 1, 2))
    jax.block_until_ready((y2, y2_ref))
    assert y2.shape == (2, 32, 16, 16), y2.shape
    err2 = float(jnp.max(jnp.abs(y2 - y2_ref)))
    assert err2 < 6e-2, f"direct 3x3 Conv kernel mismatch vs reference: {err2}"

    # ---- 2) Full ACMneck forward (all Conv+BN+SiLU through the kernels) -----
    base_channels = 4
    batch = 2
    f0 = jax.random.normal(k0, (batch, base_channels * 2, 32, 32), jnp.float32)
    f1 = jax.random.normal(k1, (batch, base_channels * 4, 16, 16), jnp.float32)
    f2 = jax.random.normal(k2, (batch, base_channels * 8, 8, 8), jnp.float32)
    f3 = jax.random.normal(k3, (batch, base_channels * 16, 4, 4), jnp.float32)

    params = make_acmneck(ParamGen(seed=0), base_channels)

    P2, P3, P4, P5 = acmneck_nchw(params, f0, f1, f2, f3)
    jax.block_until_ready((P2, P3, P4, P5))

    assert P2.shape == (batch, base_channels * 2, 32, 32), P2.shape
    assert P3.shape == (batch, base_channels * 4, 16, 16), P3.shape
    assert P4.shape == (batch, base_channels * 8, 8, 8), P4.shape
    assert P5.shape == (batch, base_channels * 16, 4, 4), P5.shape
    assert all(bool(jnp.all(jnp.isfinite(t))) for t in (P2, P3, P4, P5))

    print("KERNEL_OK")
</pallas_src>

<mosaic_0001>
module attributes {stable_mosaic.version = 11 : i64} {
  func.func @_mm_resident_kernel(%arg0: i32, %arg1: memref<128x72xbf16, #tpu.memory_space<vmem>>, %arg2: memref<72x16xbf16, #tpu.memory_space<vmem>>, %arg3: memref<1x16xf32, #tpu.memory_space<vmem>>, %arg4: memref<128x16xbf16, #tpu.memory_space<vmem>>) attributes {dimension_semantics = [#tpu.dimension_semantics<parallel>], iteration_bounds = array<i64: 1>, scalar_prefetch = 0 : i64, scratch_operands = 0 : i64, tpu.core_type = #tpu.core_type<tc>, window_params = [{transform_indices = @transform_0, window_bounds = array<i64: 128, 72>}, {pipeline_mode = #tpu.pipeline_mode<synchronous>, transform_indices = @transform_1, window_bounds = array<i64: 72, 16>}, {pipeline_mode = #tpu.pipeline_mode<synchronous>, transform_indices = @transform_2, window_bounds = array<i64: 1, 16>}, {transform_indices = @transform_3, window_bounds = array<i64: 128, 16>}]} {
    %c0 = arith.constant 0 : index
    %c0_0 = arith.constant 0 : index
    %0 = vector.load %arg1[%c0, %c0_0] : memref<128x72xbf16, #tpu.memory_space<vmem>>, vector<128x72xbf16>
    %c0_1 = arith.constant 0 : index
    %c0_2 = arith.constant 0 : index
    %1 = vector.load %arg2[%c0_1, %c0_2] : memref<72x16xbf16, #tpu.memory_space<vmem>>, vector<72x16xbf16>
    %cst = arith.constant dense<0.000000e+00> : vector<128x16xf32>
    %2 = tpu.matmul %0, %1, %cst {dimension_numbers = #tpu.dot_dimension_numbers<[1], [0], [0], [1], [0, 0, 1, 1], [], []>} : vector<128x72xbf16>, vector<72x16xbf16>, vector<128x16xf32> -> vector<128x16xf32>
    %c0_3 = arith.constant 0 : index
    %c0_4 = arith.constant 0 : index
    %3 = vector.load %arg3[%c0_3, %c0_4] : memref<1x16xf32, #tpu.memory_space<vmem>>, vector<1x16xf32>
    %4 = vector.broadcast %3 : vector<1x16xf32> to vector<128x16xf32>
    %5 = arith.addf %2, %4 : vector<128x16xf32>
    %6 = arith.negf %5 : vector<128x16xf32>
    %7 = math.exp %6 : vector<128x16xf32>
    %cst_5 = arith.constant 1.000000e+00 : f32
    %8 = vector.broadcast %cst_5 : f32 to vector<128x16xf32>
    %9 = arith.addf %8, %7 : vector<128x16xf32>
    %10 = arith.divf %8, %9 : vector<128x16xf32>
    %11 = arith.mulf %5, %10 : vector<128x16xf32>
    %12 = arith.truncf %11 : vector<128x16xf32> to vector<128x16xbf16>
    %c0_6 = arith.constant 0 : index
    %c0_7 = arith.constant 0 : index
    %13 = vector.load %arg4[%c0_6, %c0_7] : memref<128x16xbf16, #tpu.memory_space<vmem>>, vector<128x16xbf16>
    tpu.vector_store %arg4[%c0_6, %c0_7], %12 {strides = array<i32>} : memref<128x16xbf16, #tpu.memory_space<vmem>>, vector<128x16xbf16>,
    return
  }
  func.func @transform_0(%arg0: i32) -> (i32, i32) {
    %c0_i32 = arith.constant 0 : i32
    %c0_i32_0 = arith.constant 0 : i32
    return %arg0, %c0_i32 : i32, i32
  }
  func.func @transform_1(%arg0: i32) -> (i32, i32) {
    %c0_i32 = arith.constant 0 : i32
    %c0_i32_0 = arith.constant 0 : i32
    %c0_i32_1 = arith.constant 0 : i32
    return %c0_i32, %c0_i32_0 : i32, i32
  }
  func.func @transform_2(%arg0: i32) -> (i32, i32) {
    %c0_i32 = arith.constant 0 : i32
    %c0_i32_0 = arith.constant 0 : i32
    %c0_i32_1 = arith.constant 0 : i32
    return %c0_i32, %c0_i32_0 : i32, i32
  }
  func.func @transform_3(%arg0: i32) -> (i32, i32) {
    %c0_i32 = arith.constant 0 : i32
    %c0_i32_0 = arith.constant 0 : i32
    return %arg0, %c0_i32 : i32, i32
  }
}

</mosaic_0001>

<llo_original>
// kernel: tpu_custom_call.1
$region0: #{tpu_custom_call.1}
  #allocation0 [shape = 'u32[]', space=smem, size = 0x4, offset = 0x4, fixed_abs, tag = 'smem constant byte address 0x4 - core index']
  #allocation1 [shape = 'u32[72,128]{1,0:T(1,128)}', space=vmem, size = 0x9000, scoped, tag = 'internal scratch']
  %s0 = inlined_call_operand.vmem [shape: bf16[128,72], index: 0, kind: input, shape index: {}]
  %s1 = inlined_call_operand.vmem [shape: bf16[72,16], index: 1, kind: input, shape index: {}]
  %s2 = inlined_call_operand.vmem [shape: f32[1,16], index: 2, kind: input, shape index: {}]
  %s3 = inlined_call_operand.vmem [shape: bf16[128,16], index: 3, kind: output, shape index: {}]
  %s4 = sld [smem:[#allocation0]]
  $region22: #{tpu_custom_call.1} parent=0
    _
  %s6 = ssub.s32 1, %s4
  %s7 = scalar_select 0, %s6, %s4
  // Predicated region
  $region2: #{tpu_custom_call.1} parent=0 // pred_check
    _
  $region3: #{tpu_custom_call.1} parent=0 // pred_check_branch
    %9 = sbr.rel (0) target = $region5
  $region4: #{tpu_custom_call.1} parent=0 // pred_region
    _
  $region5: #{tpu_custom_call.1} parent=0 // pred_fallthru
    _
  // Predicated region
  $region6: #{tpu_custom_call.1} parent=0 // pred_check
    _
  $region7: #{tpu_custom_call.1} parent=0 // pred_check_branch
    %11 = sbr.rel (0) target = $region9
  $region8: #{tpu_custom_call.1} parent=0 // pred_region
    _
  $region9: #{tpu_custom_call.1} parent=0 // pred_fallthru
    _
  // Predicated region
  $region10: #{tpu_custom_call.1} parent=0 // pred_check
    _
  $region11: #{tpu_custom_call.1} parent=0 // pred_check_branch
    %13 = sbr.rel (0) target = $region13
  $region12: #{tpu_custom_call.1} parent=0 // pred_region
    _
  $region13: #{tpu_custom_call.1} parent=0 // pred_fallthru
    _
  %v15 = vld [vmem:[%s0] sm:$0xf]
  %v16 = vld [vmem:[%s0 + $0x4] sm:$0xf]
  %v17 = vld [vmem:[%s0 + $0x8] sm:$0xf]
  %v18 = vld [vmem:[%s0 + $0xc] sm:$0xf]
  %v19 = vld [vmem:[%s0 + $0x10] sm:$0xf]
  %v20 = vld [vmem:[%s0 + $0x14] sm:$0xf]
  %v21 = vld [vmem:[%s0 + $0x18] sm:$0xf]
  %v22 = vld [vmem:[%s0 + $0x1c] sm:$0xf]
  %v23 = vld [vmem:[%s0 + $0x20] sm:$0xf]
  %v24 = vld [vmem:[%s0 + $0x24] sm:$0xf]
  %v25 = vld [vmem:[%s0 + $0x28] sm:$0xf]
  %v26 = vld [vmem:[%s0 + $0x2c] sm:$0xf]
  %v27 = vld [vmem:[%s0 + $0x30] sm:$0xf]
  %v28 = vld [vmem:[%s0 + $0x34] sm:$0xf]
  %v29 = vld [vmem:[%s0 + $0x38] sm:$0xf]
  %v30 = vld [vmem:[%s0 + $0x3c] sm:$0xf]
  %v31 = vld [vmem:[%s1] sm:$0xf]
  %v32 = vld [vmem:[%s1 + $0x4] sm:$0xf]
  %v33 = vld [vmem:[%s1 + $0x8] sm:$0xf]
  %v34 = vld [vmem:[%s1 + $0xc] sm:$0xf]
  %v35 = vld [vmem:[%s1 + $0x10] sm:$0xf]
  %v36 = vld [vmem:[%s1 + $0x14] sm:$0xf]
  %v37 = vld [vmem:[%s1 + $0x18] sm:$0xf]
  %v38 = vld [vmem:[%s1 + $0x1c] sm:$0xf]
  %v39 = vld [vmem:[%s1 + $0x20] sm:$0xf]
  %v40 = vld [vmem:[%s2] sm:$0x1]
  %v42 = vperm.slane %v40, 0
  %v60 = vunpack.c.l.b16 %v15
  %v61 = vunpack.c.l.b16 %v16
  %v62 = vunpack.c.l.b16 %v17
  %v63 = vunpack.c.l.b16 %v18
  %v64 = vunpack.c.l.b16 %v19
  %v65 = vunpack.c.l.b16 %v20
  %v66 = vunpack.c.l.b16 %v21
  %v67 = vunpack.c.l.b16 %v22
  %v68 = vunpack.c.l.b16 %v23
  %v69 = vunpack.c.l.b16 %v24
  %v70 = vunpack.c.l.b16 %v25
  %v71 = vunpack.c.l.b16 %v26
  %v72 = vunpack.c.l.b16 %v27
  %v73 = vunpack.c.l.b16 %v28
  %v74 = vunpack.c.l.b16 %v29
  %v75 = vunpack.c.l.b16 %v30
  %v76 = vpack.c.b16 %v61, %v60
  %v77 = vpack.c.b16 %v63, %v62
  %v78 = vpack.c.b16 %v65, %v64
  %v79 = vpack.c.b16 %v67, %v66
  %v80 = vpack.c.b16 %v69, %v68
  %v81 = vpack.c.b16 %v71, %v70
  %v82 = vpack.c.b16 %v73, %v72
  %v83 = vpack.c.b16 %v75, %v74
  %v93 = vunpack.c.l.b16 %v31
  %v94 = vunpack.c.l.b16 %v32
  %v95 = vunpack.c.l.b16 %v33
  %v96 = vunpack.c.l.b16 %v34
  %v97 = vunpack.c.l.b16 %v35
  %v98 = vunpack.c.l.b16 %v36
  %v99 = vunpack.c.l.b16 %v37
  %v100 = vunpack.c.l.b16 %v38
  %v101 = vunpack.c.l.b16 %v39
  %v102 = vpack.c.b16 %v94, %v93
  %v103 = vpack.c.b16 %v96, %v95
  %v104 = vpack.c.b16 %v98, %v97
  %v105 = vpack.c.b16 %v100, %v99
  %v106 = vpack.c.b16 %v101, %v101
  %vm111 = vcmask 588800
  %v113 = vsel %vm111, %v76, 0
  %v116 = vsel %vm111, %v77, 0
  %v119 = vsel %vm111, %v78, 0
  %v122 = vsel %vm111, %v79, 0
  %v125 = vsel %vm111, %v80, 0
  %v128 = vsel %vm111, %v81, 0
  %v131 = vsel %vm111, %v82, 0
  %v134 = vsel %vm111, %v83, 0
  %vm136 = vcmask 1043456
  %v138 = vsel %vm136, %v106, 0
  %140 = vmatpush.bf16.msra.mxu0 0
  %141 = vmatpush.bf16.msra.mxu0 0
  %142 = vmatpush.bf16.msra.mxu0 0
  %143 = vmatpush.bf16.msra.mxu0 %v138
  %144 = vmatpush.bf16.msra.mxu0 %v105
  %145 = vmatpush.bf16.msra.mxu0 %v104
  %146 = vmatpush.bf16.msra.mxu0 %v103
  %147 = vmatpush.bf16.msra.mxu0 %v102
  %148 = vmatmul.bf16.gmra.mxu0 %v113
  %v149 = vpop.f32.mrf.mxu0
  %v150 = vadd.f32 %v42, %v149
  %v151 = vpop.f32.mrf.mxu0
  %v152 = vadd.f32 %v42, %v151
  %153 = vmatmul.bf16.gmra.mxu0 %v116
  %v154 = vpop.f32.mrf.mxu0
  %v155 = vadd.f32 %v42, %v154
  %v156 = vpop.f32.mrf.mxu0
  %v157 = vadd.f32 %v42, %v156
  %158 = vmatmul.bf16.gmra.mxu0 %v119
  %v159 = vpop.f32.mrf.mxu0
  %v160 = vadd.f32 %v42, %v159
  %v161 = vpop.f32.mrf.mxu0
  %v162 = vadd.f32 %v42, %v161
  %163 = vmatmul.bf16.gmra.mxu0 %v122
  %v164 = vpop.f32.mrf.mxu0
  %v165 = vadd.f32 %v42, %v164
  %v166 = vpop.f32.mrf.mxu0
  %v167 = vadd.f32 %v42, %v166
  %168 = vmatmul.bf16.gmra.mxu0 %v125
  %v169 = vpop.f32.mrf.mxu0
  %v170 = vadd.f32 %v42, %v169
  %v171 = vpop.f32.mrf.mxu0
  %v172 = vadd.f32 %v42, %v171
  %173 = vmatmul.bf16.gmra.mxu0 %v128
  %v174 = vpop.f32.mrf.mxu0
  %v175 = vadd.f32 %v42, %v174
  %v176 = vpop.f32.mrf.mxu0
  %v177 = vadd.f32 %v42, %v176
  %178 = vmatmul.bf16.gmra.mxu0 %v131
  %v179 = vpop.f32.mrf.mxu0
  %v180 = vadd.f32 %v42, %v179
  %v181 = vpop.f32.mrf.mxu0
  %v182 = vadd.f32 %v42, %v181
  %183 = vmatmul.bf16.gmra.mxu0 %v134
  %v184 = vpop.f32.mrf.mxu0
  %v185 = vadd.f32 %v42, %v184
  %v186 = vpop.f32.mrf.mxu0
  %v187 = vadd.f32 %v42, %v186
  %188 = vdwg.mxu0
  %v189 = vxor.u32 %v150, 2147483648
  %v190 = vxor.u32 %v152, 2147483648
  %v191 = vxor.u32 %v155, 2147483648
  %v192 = vxor.u32 %v157, 2147483648
  %v193 = vxor.u32 %v160, 2147483648
  %v194 = vxor.u32 %v162, 2147483648
  %v195 = vxor.u32 %v165, 2147483648
  %v196 = vxor.u32 %v167, 2147483648
  %v197 = vxor.u32 %v170, 2147483648
  %v198 = vxor.u32 %v172, 2147483648
  %v199 = vxor.u32 %v175, 2147483648
  %v200 = vxor.u32 %v177, 2147483648
  %v201 = vxor.u32 %v180, 2147483648
  %v202 = vxor.u32 %v182, 2147483648
  %v203 = vxor.u32 %v185, 2147483648
  %v204 = vxor.u32 %v187, 2147483648
  %v205 = vmul.f32 %v189, 1.442695
  %v206 = vpow.pop %v205
  %v207 = vmul.f32 %v190, 1.442695
  %v208 = vpow.pop %v207
  %v209 = vmul.f32 %v191, 1.442695
  %v210 = vpow.pop %v209
  %v211 = vmul.f32 %v192, 1.442695
  %v212 = vpow.pop %v211
  %v213 = vmul.f32 %v193, 1.442695
  %v214 = vpow.pop %v213
  %v215 = vmul.f32 %v194, 1.442695
  %v216 = vpow.pop %v215
  %v217 = vmul.f32 %v195, 1.442695
  %v218 = vpow.pop %v217
  %v219 = vmul.f32 %v196, 1.442695
  %v220 = vpow.pop %v219
  %v221 = vmul.f32 %v197, 1.442695
  %v222 = vpow.pop %v221
  %v223 = vmul.f32 %v198, 1.442695
  %v224 = vpow.pop %v223
  %v225 = vmul.f32 %v199, 1.442695
  %v226 = vpow.pop %v225
  %v227 = vmul.f32 %v200, 1.442695
  %v228 = vpow.pop %v227
  %v229 = vmul.f32 %v201, 1.442695
  %v230 = vpow.pop %v229
  %v231 = vmul.f32 %v202, 1.442695
  %v232 = vpow.pop %v231
  %v233 = vmul.f32 %v203, 1.442695
  %v234 = vpow.pop %v233
  %v235 = vmul.f32 %v204, 1.442695
  %v236 = vpow.pop %v235
  %v237 = vadd.f32 %v206, 1.0
  %v238 = vadd.f32 %v208, 1.0
  %v239 = vadd.f32 %v210, 1.0
  %v240 = vadd.f32 %v212, 1.0
  %v241 = vadd.f32 %v214, 1.0
  %v242 = vadd.f32 %v216, 1.0
  %v243 = vadd.f32 %v218, 1.0
  %v244 = vadd.f32 %v220, 1.0
  %v245 = vadd.f32 %v222, 1.0
  %v246 = vadd.f32 %v224, 1.0
  %v247 = vadd.f32 %v226, 1.0
  %v248 = vadd.f32 %v228, 1.0
  %v249 = vadd.f32 %v230, 1.0
  %v250 = vadd.f32 %v232, 1.0
  %v251 = vadd.f32 %v234, 1.0
  %v252 = vadd.f32 %v236, 1.0
  %v253 = vrcp.pop %v237
  %v254 = vmul.f32 %v237, %v253
  %v255 = vsub.f32 1.0, %v254
  %v256 = vmul.f32 %v253, %v255
  %v257 = vadd.f32 %v253, %v256
  %vm258 = vweird.f32 %v237
  %vm259 = vweird.f32 %v253
  %vm260 = vmor %vm258, %vm259
  %v261 = vsel %vm260, %v253, %v257
  %v262 = vand.u32 2147483647, %v237
  %vm263 = vcmp.eq.f32.partialorder %v262, 8.507059e+37
  %v264 = vand.u32 %v237, 2147483648
  %v265 = vor.u32 1.1754944e-38, %v264
  %v266 = vsel %vm263, %v265, %v261
  %v267 = vmul.f32 1.0, %v266
  %v268 = vrcp.pop %v238
  %v269 = vmul.f32 %v238, %v268
  %v270 = vsub.f32 1.0, %v269
  %v271 = vmul.f32 %v268, %v270
  %v272 = vadd.f32 %v268, %v271
  %vm273 = vweird.f32 %v238
  %vm274 = vweird.f32 %v268
  %vm275 = vmor %vm273, %vm274
  %v276 = vsel %vm275, %v268, %v272
  %v277 = vand.u32 2147483647, %v238
  %vm278 = vcmp.eq.f32.partialorder %v277, 8.507059e+37
  %v279 = vand.u32 %v238, 2147483648
  %v280 = vor.u32 1.1754944e-38, %v279
  %v281 = vsel %vm278, %v280, %v276
  %v282 = vmul.f32 1.0, %v281
  %v283 = vrcp.pop %v239
  %v284 = vmul.f32 %v239, %v283
  %v285 = vsub.f32 1.0, %v284
  %v286 = vmul.f32 %v283, %v285
  %v287 = vadd.f32 %v283, %v286
  %vm288 = vweird.f32 %v239
  %vm289 = vweird.f32 %v283
  %vm290 = vmor %vm288, %vm289
  %v291 = vsel %vm290, %v283, %v287
  %v292 = vand.u32 2147483647, %v239
  %vm293 = vcmp.eq.f32.partialorder %v292, 8.507059e+37
  %v294 = vand.u32 %v239, 2147483648
  %v295 = vor.u32 1.1754944e-38, %v294
  %v296 = vsel %vm293, %v295, %v291
  %v297 = vmul.f32 1.0, %v296
  %v298 = vrcp.pop %v240
  %v299 = vmul.f32 %v240, %v298
  %v300 = vsub.f32 1.0, %v299
  %v301 = vmul.f32 %v298, %v300
  %v302 = vadd.f32 %v298, %v301
  %vm303 = vweird.f32 %v240
  %vm304 = vweird.f32 %v298
  %vm305 = vmor %vm303, %vm304
  %v306 = vsel %vm305, %v298, %v302
  %v307 = vand.u32 2147483647, %v240
  %vm308 = vcmp.eq.f32.partialorder %v307, 8.507059e+37
  %v309 = vand.u32 %v240, 2147483648
  %v310 = vor.u32 1.1754944e-38, %v309
  %v311 = vsel %vm308, %v310, %v306
  %v312 = vmul.f32 1.0, %v311
  %v313 = vrcp.pop %v241
  %v314 = vmul.f32 %v241, %v313
  %v315 = vsub.f32 1.0, %v314
  %v316 = vmul.f32 %v313, %v315
  %v317 = vadd.f32 %v313, %v316
  %vm318 = vweird.f32 %v241
  %vm319 = vweird.f32 %v313
  %vm320 = vmor %vm318, %vm319
  %v321 = vsel %vm320, %v313, %v317
  %v322 = vand.u32 2147483647, %v241
  %vm323 = vcmp.eq.f32.partialorder %v322, 8.507059e+37
  %v324 = vand.u32 %v241, 2147483648
  %v325 = vor.u32 1.1754944e-38, %v324
  %v326 = vsel %vm323, %v325, %v321
  %v327 = vmul.f32 1.0, %v326
  %v328 = vrcp.pop %v242
  %v329 = vmul.f32 %v242, %v328
  %v330 = vsub.f32 1.0, %v329
  %v331 = vmul.f32 %v328, %v330
  %v332 = vadd.f32 %v328, %v331
  %vm333 = vweird.f32 %v242
  %vm334 = vweird.f32 %v328
  %vm335 = vmor %vm333, %vm334
  %v336 = vsel %vm335, %v328, %v332
  %v337 = vand.u32 2147483647, %v242
  %vm338 = vcmp.eq.f32.partialorder %v337, 8.507059e+37
  %v339 = vand.u32 %v242, 2147483648
  %v340 = vor.u32 1.1754944e-38, %v339
  %v341 = vsel %vm338, %v340, %v336
  %v342 = vmul.f32 1.0, %v341
  %v343 = vrcp.pop %v243
  %v344 = vmul.f32 %v243, %v343
  %v345 = vsub.f32 1.0, %v344
  %v346 = vmul.f32 %v343, %v345
  %v347 = vadd.f32 %v343, %v346
  %vm348 = vweird.f32 %v243
  %vm349 = vweird.f32 %v343
  %vm350 = vmor %vm348, %vm349
  %v351 = vsel %vm350, %v343, %v347
  %v352 = vand.u32 2147483647, %v243
  %vm353 = vcmp.eq.f32.partialorder %v352, 8.507059e+37
  %v354 = vand.u32 %v243, 2147483648
  %v355 = vor.u32 1.1754944e-38, %v354
  %v356 = vsel %vm353, %v355, %v351
  %v357 = vmul.f32 1.0, %v356
  %v358 = vrcp.pop %v244
  %v359 = vmul.f32 %v244, %v358
  %v360 = vsub.f32 1.0, %v359
  %v361 = vmul.f32 %v358, %v360
  %v362 = vadd.f32 %v358, %v361
  %vm363 = vweird.f32 %v244
  %vm364 = vweird.f32 %v358
  %vm365 = vmor %vm363, %vm364
  %v366 = vsel %vm365, %v358, %v362
  %v367 = vand.u32 2147483647, %v244
  %vm368 = vcmp.eq.f32.partialorder %v367, 8.507059e+37
  %v369 = vand.u32 %v244, 2147483648
  %v370 = vor.u32 1.1754944e-38, %v369
  %v371 = vsel %vm368, %v370, %v366
  %v372 = vmul.f32 1.0, %v371
  %v373 = vrcp.pop %v245
  %v374 = vmul.f32 %v245, %v373
  %v375 = vsub.f32 1.0, %v374
  %v376 = vmul.f32 %v373, %v375
  %v377 = vadd.f32 %v373, %v376
  %vm378 = vweird.f32 %v245
  %vm379 = vweird.f32 %v373
  %vm380 = vmor %vm378, %vm379
  %v381 = vsel %vm380, %v373, %v377
  %v382 = vand.u32 2147483647, %v245
  %vm383 = vcmp.eq.f32.partialorder %v382, 8.507059e+37
  %v384 = vand.u32 %v245, 2147483648
  %v385 = vor.u32 1.1754944e-38, %v384
  %v386 = vsel %vm383, %v385, %v381
  %v387 = vmul.f32 1.0, %v386
  %v388 = vrcp.pop %v246
  %v389 = vmul.f32 %v246, %v388
  %v390 = vsub.f32 1.0, %v389
  %v391 = vmul.f32 %v388, %v390
  %v392 = vadd.f32 %v388, %v391
  %vm393 = vweird.f32 %v246
  %vm394 = vweird.f32 %v388
  %vm395 = vmor %vm393, %vm394
  %v396 = vsel %vm395, %v388, %v392
  %v397 = vand.u32 2147483647, %v246
  %vm398 = vcmp.eq.f32.partialorder %v397, 8.507059e+37
  %v399 = vand.u32 %v246, 2147483648
  %v400 = vor.u32 1.1754944e-38, %v399
  %v401 = vsel %vm398, %v400, %v396
  %v402 = vmul.f32 1.0, %v401
  %v403 = vrcp.pop %v247
  %v404 = vmul.f32 %v247, %v403
  %v405 = vsub.f32 1.0, %v404
  %v406 = vmul.f32 %v403, %v405
  %v407 = vadd.f32 %v403, %v406
  %vm408 = vweird.f32 %v247
  %vm409 = vweird.f32 %v403
  %vm410 = vmor %vm408, %vm409
  %v411 = vsel %vm410, %v403, %v407
  %v412 = vand.u32 2147483647, %v247
  %vm413 = vcmp.eq.f32.partialorder %v412, 8.507059e+37
  %v414 = vand.u32 %v247, 2147483648
  %v415 = vor.u32 1.1754944e-38, %v414
  %v416 = vsel %vm413, %v415, %v411
  %v417 = vmul.f32 1.0, %v416
  %v418 = vrcp.pop %v248
  %v419 = vmul.f32 %v248, %v418
  %v420 = vsub.f32 1.0, %v419
  %v421 = vmul.f32 %v418, %v420
  %v422 = vadd.f32 %v418, %v421
  %vm423 = vweird.f32 %v248
  %vm424 = vweird.f32 %v418
  %vm425 = vmor %vm423, %vm424
  %v426 = vsel %vm425, %v418, %v422
  %v427 = vand.u32 2147483647, %v248
  %vm428 = vcmp.eq.f32.partialorder %v427, 8.507059e+37
  %v429 = vand.u32 %v248, 2147483648
  %v430 = vor.u32 1.1754944e-38, %v429
  %v431 = vsel %vm428, %v430, %v426
  %v432 = vmul.f32 1.0, %v431
  %v433 = vrcp.pop %v249
  %v434 = vmul.f32 %v249, %v433
  %v435 = vsub.f32 1.0, %v434
  %v436 = vmul.f32 %v433, %v435
  %v437 = vadd.f32 %v433, %v436
  %vm438 = vweird.f32 %v249
  %vm439 = vweird.f32 %v433
  %vm440 = vmor %vm438, %vm439
  %v441 = vsel %vm440, %v433, %v437
  %v442 = vand.u32 2147483647, %v249
  %vm443 = vcmp.eq.f32.partialorder %v442, 8.507059e+37
  %v444 = vand.u32 %v249, 2147483648
  %v445 = vor.u32 1.1754944e-38, %v444
  %v446 = vsel %vm443, %v445, %v441
  %v447 = vmul.f32 1.0, %v446
  %v448 = vrcp.pop %v250
  %v449 = vmul.f32 %v250, %v448
  %v450 = vsub.f32 1.0, %v449
  %v451 = vmul.f32 %v448, %v450
  %v452 = vadd.f32 %v448, %v451
  %vm453 = vweird.f32 %v250
  %vm454 = vweird.f32 %v448
  %vm455 = vmor %vm453, %vm454
  %v456 = vsel %vm455, %v448, %v452
  %v457 = vand.u32 2147483647, %v250
  %vm458 = vcmp.eq.f32.partialorder %v457, 8.507059e+37
  %v459 = vand.u32 %v250, 2147483648
  %v460 = vor.u32 1.1754944e-38, %v459
  %v461 = vsel %vm458, %v460, %v456
  %v462 = vmul.f32 1.0, %v461
  %v463 = vrcp.pop %v251
  %v464 = vmul.f32 %v251, %v463
  %v465 = vsub.f32 1.0, %v464
  %v466 = vmul.f32 %v463, %v465
  %v467 = vadd.f32 %v463, %v466
  %vm468 = vweird.f32 %v251
  %vm469 = vweird.f32 %v463
  %vm470 = vmor %vm468, %vm469
  %v471 = vsel %vm470, %v463, %v467
  %v472 = vand.u32 2147483647, %v251
  %vm473 = vcmp.eq.f32.partialorder %v472, 8.507059e+37
  %v474 = vand.u32 %v251, 2147483648
  %v475 = vor.u32 1.1754944e-38, %v474
  %v476 = vsel %vm473, %v475, %v471
  %v477 = vmul.f32 1.0, %v476
  %v478 = vrcp.pop %v252
  %v479 = vmul.f32 %v252, %v478
  %v480 = vsub.f32 1.0, %v479
  %v481 = vmul.f32 %v478, %v480
  %v482 = vadd.f32 %v478, %v481
  %vm483 = vweird.f32 %v252
  %vm484 = vweird.f32 %v478
  %vm485 = vmor %vm483, %vm484
  %v486 = vsel %vm485, %v478, %v482
  %v487 = vand.u32 2147483647, %v252
  %vm488 = vcmp.eq.f32.partialorder %v487, 8.507059e+37
  %v489 = vand.u32 %v252, 2147483648
  %v490 = vor.u32 1.1754944e-38, %v489
  %v491 = vsel %vm488, %v490, %v486
  %v492 = vmul.f32 1.0, %v491
  %v493 = vmul.f32 %v150, %v267
  %v494 = vmul.f32 %v152, %v282
  %v495 = vmul.f32 %v155, %v297
  %v496 = vmul.f32 %v157, %v312
  %v497 = vmul.f32 %v160, %v327
  %v498 = vmul.f32 %v162, %v342
  %v499 = vmul.f32 %v165, %v357
  %v500 = vmul.f32 %v167, %v372
  %v501 = vmul.f32 %v170, %v387
  %v502 = vmul.f32 %v172, %v402
  %v503 = vmul.f32 %v175, %v417
  %v504 = vmul.f32 %v177, %v432
  %v505 = vmul.f32 %v180, %v447
  %v506 = vmul.f32 %v182, %v462
  %v507 = vmul.f32 %v185, %v477
  %v508 = vmul.f32 %v187, %v492
  %v509 = vpack.c.bf16 %v493, %v493
  %v510 = vpack.c.bf16 %v494, %v494
  %v511 = vpack.c.bf16 %v495, %v495
  %v512 = vpack.c.bf16 %v496, %v496
  %v513 = vpack.c.bf16 %v497, %v497
  %v514 = vpack.c.bf16 %v498, %v498
  %v515 = vpack.c.bf16 %v499, %v499
  %v516 = vpack.c.bf16 %v500, %v500
  %v517 = vpack.c.bf16 %v501, %v501
  %v518 = vpack.c.bf16 %v502, %v502
  %v519 = vpack.c.bf16 %v503, %v503
  %v520 = vpack.c.bf16 %v504, %v504
  %v521 = vpack.c.bf16 %v505, %v505
  %v522 = vpack.c.bf16 %v506, %v506
  %v523 = vpack.c.bf16 %v507, %v507
  %v524 = vpack.c.bf16 %v508, %v508
  %vm525 = vcmask 125952
  %526 = vst.msk [vmem:[%s3] sm:$0xf] %vm525, %v509
  %527 = vst.msk [vmem:[%s3 + $0x4] sm:$0xf] %vm525, %v510
  %528 = vst.msk [vmem:[%s3 + $0x8] sm:$0xf] %vm525, %v511
  %529 = vst.msk [vmem:[%s3 + $0xc] sm:$0xf] %vm525, %v512
  %530 = vst.msk [vmem:[%s3 + $0x10] sm:$0xf] %vm525, %v513
  %531 = vst.msk [vmem:[%s3 + $0x14] sm:$0xf] %vm525, %v514
  %532 = vst.msk [vmem:[%s3 + $0x18] sm:$0xf] %vm525, %v515
  %533 = vst.msk [vmem:[%s3 + $0x1c] sm:$0xf] %vm525, %v516
  %534 = vst.msk [vmem:[%s3 + $0x20] sm:$0xf] %vm525, %v517
  %535 = vst.msk [vmem:[%s3 + $0x24] sm:$0xf] %vm525, %v518
  %536 = vst.msk [vmem:[%s3 + $0x28] sm:$0xf] %vm525, %v519
  %537 = vst.msk [vmem:[%s3 + $0x2c] sm:$0xf] %vm525, %v520
  %538 = vst.msk [vmem:[%s3 + $0x30] sm:$0xf] %vm525, %v521
  %539 = vst.msk [vmem:[%s3 + $0x34] sm:$0xf] %vm525, %v522
  %540 = vst.msk [vmem:[%s3 + $0x38] sm:$0xf] %vm525, %v523
  %541 = vst.msk [vmem:[%s3 + $0x3c] sm:$0xf] %vm525, %v524
  // Predicated region
  $region14: #{tpu_custom_call.1} parent=0 // pred_check
    _
  $region15: #{tpu_custom_call.1} parent=0 // pred_check_branch
    %543 = sbr.rel (0) target = $region17
  $region16: #{tpu_custom_call.1} parent=0 // pred_region
    _
  $region17: #{tpu_custom_call.1} parent=0 // pred_fallthru
    _
  // Predicated region
  $region18: #{tpu_custom_call.1} parent=0 // pred_check
    _
  $region19: #{tpu_custom_call.1} parent=0 // pred_check_branch
    %545 = sbr.rel (0) target = $region21
  $region20: #{tpu_custom_call.1} parent=0 // pred_region
    _
  $region21: #{tpu_custom_call.1} parent=0 // pred_fallthru
    _

</llo_original>
